<compile_context>
chip_gen: v5e
topology: v5e:2x2
jax: 0.10.0
libtpu: 0.0.40
codegen_flags: <defaults>
</compile_context>

<pallas_src>
import functools

import jax
import jax.numpy as jnp
from jax.experimental import pallas as pl
from jax.experimental.pallas import tpu as pltpu

EPS = 1e-5  # LayerNorm eps (added to std, matching the custom LayerNorm)


def _round_up(v, m):
    return ((v + m - 1) // m) * m


def _vmem_limit_bytes():
    """Scoped-VMEM request: physical capacity minus ~25% headroom."""
    try:
        cap = int(pltpu.get_tpu_info().vmem_capacity_bytes)
    except Exception:  # info unavailable -> assume the smallest (v7x, 64 MiB)
        cap = 64 * 1024 * 1024
    return min(cap - cap // 4, 112 * 1024 * 1024)


def _pick_k_chunk(d_in, k_chunk):
    """Contraction-dim tile; must be a 128-multiple that divides D_in."""
    if k_chunk is not None:
        if 0 < k_chunk < d_in and k_chunk % 128 == 0 and d_in % k_chunk == 0:
            return k_chunk
        return d_in
    if d_in >= 2048:  # large weight: keep per-step W tile small (v7x VMEM)
        for cand in (1024, 512, 256):
            if d_in % cand == 0:
                return cand
    # TODO(synk): D_in not divisible by a 128-multiple chunk falls back to a
    # fully resident W^T; a ragged last-K tile would need pl.BoundedSlice.
    return d_in


def _ln_relu_epilogue(y, p_ref, o_ref, *, d_real):
    """Custom (unbiased-std) LayerNorm + affine + ReLU on f32 `y`."""
    d_pad = y.shape[-1]
    inv_n = 1.0 / d_real
    inv_nm1 = 1.0 / (d_real - 1)
    # Invariant: padded feature columns of y are exactly 0 (W columns and the
    # bias are zero-padded in prepare_id_head_params), so the unmasked sum is
    # already the real-column sum; each padded column contributes mean^2 to
    # the sum of squared deviations and is removed analytically below.
    mean = jnp.sum(y, axis=-1, keepdims=True) * inv_n
    diff = y - mean
    ssq = jnp.sum(diff * diff, axis=-1, keepdims=True)
    if d_pad != d_real:
        ssq = jnp.maximum(ssq - (d_pad - d_real) * (mean * mean), 0.0)
    std = jnp.sqrt(ssq * inv_nm1)
    inv = pl.reciprocal(std + EPS, approx=True)   # EUP slot, frees the VPU
    scale = inv * p_ref[1:2, :]                    # fold gamma into the scale
    out = diff * scale + p_ref[2:3, :]
    o_ref[...] = jnp.maximum(out, 0.0).astype(o_ref.dtype)


def _fused_resident_kernel(x_ref, w_ref, p_ref, o_ref, *, d_real):
    """Single-K-step path: full W^T resident (single-buffered) in VMEM."""
    y = jnp.dot(x_ref[...], w_ref[...], preferred_element_type=jnp.float32)
    y = y + p_ref[0:1, :]
    _ln_relu_epilogue(y, p_ref, o_ref, d_real=d_real)


def _fused_ktiled_kernel(x_ref, w_ref, p_ref, o_ref, acc_ref, *, d_real):
    """K-tiled path: accumulate y in f32 scratch, LN+ReLU at the last step."""
    k = pl.program_id(1)

    @pl.when(k == 0)
    def _():
        acc_ref[...] = jnp.zeros_like(acc_ref)

    acc_ref[...] += jnp.dot(x_ref[...], w_ref[...],
                            preferred_element_type=jnp.float32)

    @pl.when(k == pl.num_programs(1) - 1)
    def _():
        y = acc_ref[...] + p_ref[0:1, :]
        _ln_relu_epilogue(y, p_ref, o_ref, d_real=d_real)


def prepare_id_head_params(w_t, b, gamma, beta, *, weight_dtype=None):
    """One-time (model-load) parameter prep — keep OUT of the per-step path.

    w_t: (D_in, D_out) pre-transposed Linear weight.
    b, gamma, beta: (D_out,).
    weight_dtype: optionally cast W (e.g. jnp.bfloat16 on v6e/v7x for ~3x MXU
      throughput; feed matching bf16 activations to the kernel).
    Returns (w_t_padded (D_in, D_pad), params (3, D_pad) f32, d_out).
    """
    d_in, d_out = w_t.shape
    d_pad = max(_round_up(d_out, 128), 128)  # lane-dense output columns
    if weight_dtype is not None:
        w_t = w_t.astype(weight_dtype)
    if d_pad != d_out:
        # Zero padding is a correctness invariant relied on by the kernel
        # epilogue (mask-free mean / analytic variance correction).
        w_t = jnp.pad(w_t, ((0, 0), (0, d_pad - d_out)))
        b = jnp.pad(b, (0, d_pad - d_out))
        gamma = jnp.pad(gamma, (0, d_pad - d_out))
        beta = jnp.pad(beta, (0, d_pad - d_out))
    params = jnp.stack([b.astype(jnp.float32),
                        gamma.astype(jnp.float32),
                        beta.astype(jnp.float32)], axis=0)  # (3, D_pad)
    return w_t, params, d_out


@functools.partial(
    jax.jit, static_argnames=("d_out", "block_b", "k_chunk", "x_buffers"))
def id_head_fwd(x, w_t_padded, params, *, d_out, block_b=256, k_chunk=None,
                x_buffers=None):
    """Fused Linear + custom (unbiased-std) LayerNorm + ReLU.

    x:          (B, D_in) activations (f32 or bf16; bf16 preferred on v6e/v7x)
    w_t_padded: (D_in, D_pad) from prepare_id_head_params
    params:     (3, D_pad) f32 packed [bias; gamma; beta]
    d_out:      real (unpadded) feature count
    x_buffers:  optional pipeline depth for the x row tiles (v5e sweep knob)
    Returns (B, d_out) in x.dtype.
    """
    B, d_in = x.shape
    w_d_in, d_pad = w_t_padded.shape
    assert w_d_in == d_in and params.shape == (3, d_pad)
    assert d_out >= 2, "unbiased std needs at least 2 features"

    # Batch tile: multiple of 8 sublanes; force >= 2 grid steps (when B > 8)
    # so dimension_semantics=('parallel',) keeps both v7x TensorCores busy.
    bb = _round_up(min(block_b, B), 8)
    n_b = pl.cdiv(B, bb)
    if n_b < 2 and B > 8:
        bb = _round_up(pl.cdiv(B, 2), 8)
        n_b = pl.cdiv(B, bb)
    b_pad = n_b * bb
    if b_pad != B:
        x = jnp.pad(x, ((0, b_pad - B), (0, 0)))

    tk = _pick_k_chunk(d_in, k_chunk)
    n_k = d_in // tk

    const_mode = pl.Buffered(1)  # constant-index inputs: no double buffering
    x_mode = pl.Buffered(x_buffers) if x_buffers is not None else None

    compiler_params = pltpu.CompilerParams(
        dimension_semantics=(("parallel",) if n_k == 1
                             else ("parallel", "arbitrary")),
        vmem_limit_bytes=_vmem_limit_bytes(),
    )

    if n_k == 1:
        out = pl.pallas_call(
            functools.partial(_fused_resident_kernel, d_real=d_out),
            out_shape=jax.ShapeDtypeStruct((b_pad, d_pad), x.dtype),
            grid=(n_b,),
            in_specs=[
                pl.BlockSpec((bb, d_in), lambda i: (i, 0),
                             pipeline_mode=x_mode),
                pl.BlockSpec((d_in, d_pad), lambda i: (0, 0),
                             pipeline_mode=const_mode),
                pl.BlockSpec((3, d_pad), lambda i: (0, 0),
                             pipeline_mode=const_mode),
            ],
            out_specs=pl.BlockSpec((bb, d_pad), lambda i: (i, 0)),
            compiler_params=compiler_params,
        )(x, w_t_padded, params)
    else:
        out = pl.pallas_call(
            functools.partial(_fused_ktiled_kernel, d_real=d_out),
            out_shape=jax.ShapeDtypeStruct((b_pad, d_pad), x.dtype),
            grid=(n_b, n_k),
            in_specs=[
                pl.BlockSpec((bb, tk), lambda i, k: (i, k),
                             pipeline_mode=x_mode),
                pl.BlockSpec((tk, d_pad), lambda i, k: (k, 0)),
                pl.BlockSpec((3, d_pad), lambda i, k: (0, 0),
                             pipeline_mode=const_mode),
            ],
            out_specs=pl.BlockSpec((bb, d_pad), lambda i, k: (i, 0)),
            scratch_shapes=[pltpu.VMEM((bb, d_pad), jnp.float32)],
            compiler_params=compiler_params,
        )(x, w_t_padded, params)

    return out[:B, :d_out]


def _reference(x, w_t, b, gamma, beta):
    x32 = x.astype(jnp.float32)
    w32 = w_t.astype(jnp.float32)
    y = x32 @ w32 + b.astype(jnp.float32)[None, :]
    n = y.shape[-1]
    mean = jnp.mean(y, axis=-1, keepdims=True)
    diff = y - mean
    std = jnp.sqrt(jnp.sum(diff * diff, axis=-1, keepdims=True) / (n - 1))
    y = diff / (std + EPS)
    y = y * gamma.astype(jnp.float32)[None, :] + beta.astype(jnp.float32)[None, :]
    return jnp.maximum(y, 0.0)


def _make_case(key, B, d_in, d_out, dtype):
    k1, k2, k3, k4 = jax.random.split(key, 4)
    x = jax.random.normal(k1, (B, d_in), dtype=jnp.float32).astype(dtype)
    bound = 1.0 / (d_in ** 0.5)
    w_t = jax.random.uniform(k2, (d_in, d_out), minval=-bound, maxval=bound,
                             dtype=jnp.float32).astype(dtype)
    b = jax.random.uniform(k3, (d_out,), minval=-bound, maxval=bound,
                           dtype=jnp.float32)
    gamma = jax.random.uniform(k4, (d_out,), dtype=jnp.float32)
    beta = jnp.zeros((d_out,), dtype=jnp.float32)
    return x, w_t, b, gamma, beta


if __name__ == "__main__":
    key = jax.random.PRNGKey(0)
    k1, k2, k3 = jax.random.split(key, 3)

    # --- Test 1: f32, non-128-multiple feature dim, 2-step batch grid -------
    x, w_t, b, gamma, beta = _make_case(k1, B=48, d_in=256, d_out=192,
                                        dtype=jnp.float32)
    wp, pp, d_out = prepare_id_head_params(w_t, b, gamma, beta)  # one-time
    out = jax.block_until_ready(id_head_fwd(x, wp, pp, d_out=d_out))
    ref = _reference(x, w_t, b, gamma, beta)
    assert out.shape == (48, 192)
    assert jnp.allclose(out.astype(jnp.float32), ref, atol=5e-3, rtol=5e-3), \
        "mismatch vs reference (f32 / padded-feature path)"

    # --- Test 2: bf16 activations/weights, ragged batch, multi-step grid ----
    x, w_t, b, gamma, beta = _make_case(k2, B=300, d_in=128, d_out=256,
                                        dtype=jnp.bfloat16)
    wp, pp, d_out = prepare_id_head_params(w_t, b, gamma, beta)
    out = jax.block_until_ready(
        id_head_fwd(x, wp, pp, d_out=d_out, block_b=128))
    ref = _reference(x, w_t, b, gamma, beta)
    assert out.shape == (300, 256)
    assert out.dtype == jnp.bfloat16
    assert jnp.allclose(out.astype(jnp.float32), ref, atol=3e-2, rtol=3e-2), \
        "mismatch vs reference (bf16 path)"

    # --- Test 3: K-tiled contraction (f32 accumulator scratch) --------------
    x, w_t, b, gamma, beta = _make_case(k3, B=64, d_in=512, d_out=200,
                                        dtype=jnp.float32)
    wp, pp, d_out = prepare_id_head_params(w_t, b, gamma, beta)
    out = jax.block_until_ready(
        id_head_fwd(x, wp, pp, d_out=d_out, k_chunk=128))
    ref = _reference(x, w_t, b, gamma, beta)
    assert out.shape == (64, 200)
    assert jnp.allclose(out.astype(jnp.float32), ref, atol=1e-2, rtol=1e-2), \
        "mismatch vs reference (K-tiled path)"

    print("KERNEL_OK")
</pallas_src>

<mosaic_0001>
module attributes {stable_mosaic.version = 11 : i64} {
  func.func @_fused_resident_kernel(%arg0: i32, %arg1: memref<24x256xf32, #tpu.memory_space<vmem>>, %arg2: memref<256x256xf32, #tpu.memory_space<vmem>>, %arg3: memref<3x256xf32, #tpu.memory_space<vmem>>, %arg4: memref<24x256xf32, #tpu.memory_space<vmem>>) attributes {dimension_semantics = [#tpu.dimension_semantics<parallel>], iteration_bounds = array<i64: 2>, scalar_prefetch = 0 : i64, scratch_operands = 0 : i64, tpu.core_type = #tpu.core_type<tc>, window_params = [{transform_indices = @transform_0, window_bounds = array<i64: 24, 256>}, {pipeline_mode = #tpu.pipeline_mode<synchronous>, transform_indices = @transform_1, window_bounds = array<i64: 256, 256>}, {pipeline_mode = #tpu.pipeline_mode<synchronous>, transform_indices = @transform_2, window_bounds = array<i64: 3, 256>}, {transform_indices = @transform_3, window_bounds = array<i64: 24, 256>}]} {
    %c0 = arith.constant 0 : index
    %c0_0 = arith.constant 0 : index
    %0 = vector.load %arg1[%c0, %c0_0] : memref<24x256xf32, #tpu.memory_space<vmem>>, vector<24x256xf32>
    %c0_1 = arith.constant 0 : index
    %c0_2 = arith.constant 0 : index
    %1 = vector.load %arg2[%c0_1, %c0_2] : memref<256x256xf32, #tpu.memory_space<vmem>>, vector<256x256xf32>
    %cst = arith.constant dense<0.000000e+00> : vector<24x256xf32>
    %2 = tpu.matmul %0, %1, %cst {dimension_numbers = #tpu.dot_dimension_numbers<[1], [0], [0], [1], [0, 0, 1, 1], [], []>} : vector<24x256xf32>, vector<256x256xf32>, vector<24x256xf32> -> vector<24x256xf32>
    %c0_3 = arith.constant 0 : index
    %c0_4 = arith.constant 0 : index
    %3 = vector.load %arg3[%c0_3, %c0_4] : memref<3x256xf32, #tpu.memory_space<vmem>>, vector<1x256xf32>
    %4 = vector.broadcast %3 : vector<1x256xf32> to vector<24x256xf32>
    %5 = arith.addf %2, %4 : vector<24x256xf32>
    %cst_5 = arith.constant dense<0.000000e+00> : vector<24xf32>
    %6 = vector.multi_reduction <add>, %5, %cst_5 [1] : vector<24x256xf32> to vector<24xf32>
    %7 = vector.shape_cast %6 : vector<24xf32> to vector<24x1xf32>
    %cst_6 = arith.constant 0.00520833349 : f32
    %8 = vector.broadcast %cst_6 : f32 to vector<24x1xf32>
    %9 = arith.mulf %7, %8 : vector<24x1xf32>
    %10 = vector.broadcast %9 : vector<24x1xf32> to vector<24x256xf32>
    %11 = arith.subf %5, %10 : vector<24x256xf32>
    %12 = arith.mulf %11, %11 : vector<24x256xf32>
    %cst_7 = arith.constant dense<0.000000e+00> : vector<24xf32>
    %13 = vector.multi_reduction <add>, %12, %cst_7 [1] : vector<24x256xf32> to vector<24xf32>
    %14 = vector.shape_cast %13 : vector<24xf32> to vector<24x1xf32>
    %15 = arith.mulf %9, %9 : vector<24x1xf32>
    %cst_8 = arith.constant 6.400000e+01 : f32
    %16 = vector.broadcast %cst_8 : f32 to vector<24x1xf32>
    %17 = arith.mulf %16, %15 : vector<24x1xf32>
    %18 = arith.subf %14, %17 : vector<24x1xf32>
    %cst_9 = arith.constant 0.000000e+00 : f32
    %19 = vector.broadcast %cst_9 : f32 to vector<24x1xf32>
    %20 = arith.maximumf %18, %19 : vector<24x1xf32>
    %cst_10 = arith.constant 0.00523560215 : f32
    %21 = vector.broadcast %cst_10 : f32 to vector<24x1xf32>
    %22 = arith.mulf %20, %21 : vector<24x1xf32>
    %23 = math.sqrt %22 : vector<24x1xf32>
    %cst_11 = arith.constant 9.99999974E-6 : f32
    %24 = vector.broadcast %cst_11 : f32 to vector<24x1xf32>
    %25 = arith.addf %23, %24 : vector<24x1xf32>
    %26 = tpu.reciprocal %25 {approx = true} : vector<24x1xf32> -> vector<24x1xf32>
    %c1 = arith.constant 1 : index
    %c0_12 = arith.constant 0 : index
    %27 = vector.load %arg3[%c1, %c0_12] : memref<3x256xf32, #tpu.memory_space<vmem>>, vector<1x256xf32>
    %28 = vector.broadcast %26 : vector<24x1xf32> to vector<24x256xf32>
    %29 = vector.broadcast %27 : vector<1x256xf32> to vector<24x256xf32>
    %30 = arith.mulf %28, %29 : vector<24x256xf32>
    %31 = arith.mulf %11, %30 : vector<24x256xf32>
    %c2 = arith.constant 2 : index
    %c0_13 = arith.constant 0 : index
    %32 = vector.load %arg3[%c2, %c0_13] : memref<3x256xf32, #tpu.memory_space<vmem>>, vector<1x256xf32>
    %33 = vector.broadcast %32 : vector<1x256xf32> to vector<24x256xf32>
    %34 = arith.addf %31, %33 : vector<24x256xf32>
    %cst_14 = arith.constant 0.000000e+00 : f32
    %35 = vector.broadcast %cst_14 : f32 to vector<24x256xf32>
    %36 = arith.maximumf %34, %35 : vector<24x256xf32>
    %c0_15 = arith.constant 0 : index
    %c0_16 = arith.constant 0 : index
    %37 = vector.load %arg4[%c0_15, %c0_16] : memref<24x256xf32, #tpu.memory_space<vmem>>, vector<24x256xf32>
    tpu.vector_store %arg4[%c0_15, %c0_16], %36 {strides = array<i32>} : memref<24x256xf32, #tpu.memory_space<vmem>>, vector<24x256xf32>,
    return
  }
  func.func @transform_0(%arg0: i32) -> (i32, i32) {
    %c0_i32 = arith.constant 0 : i32
    %c0_i32_0 = arith.constant 0 : i32
    return %arg0, %c0_i32 : i32, i32
  }
  func.func @transform_1(%arg0: i32) -> (i32, i32) {
    %c0_i32 = arith.constant 0 : i32
    %c0_i32_0 = arith.constant 0 : i32
    %c0_i32_1 = arith.constant 0 : i32
    return %c0_i32, %c0_i32_0 : i32, i32
  }
  func.func @transform_2(%arg0: i32) -> (i32, i32) {
    %c0_i32 = arith.constant 0 : i32
    %c0_i32_0 = arith.constant 0 : i32
    %c0_i32_1 = arith.constant 0 : i32
    return %c0_i32, %c0_i32_0 : i32, i32
  }
  func.func @transform_3(%arg0: i32) -> (i32, i32) {
    %c0_i32 = arith.constant 0 : i32
    %c0_i32_0 = arith.constant 0 : i32
    return %arg0, %c0_i32 : i32, i32
  }
}

</mosaic_0001>

<llo_original>
// kernel: id_head_fwd.1
$region0: #{id_head_fwd.1}
  #allocation0 [shape = 'u32[]', space=smem, size = 0x4, offset = 0x4, fixed_abs, tag = 'smem constant byte address 0x4 - core index']
  #allocation1 [shape = 'u32[72,128]{1,0:T(1,128)}', space=vmem, size = 0x9000, scoped, tag = 'internal scratch']
  %s0 = inlined_call_operand.hbm [shape: f32[48,256], index: 0, kind: input, shape index: {}]
  %s1 = inlined_call_operand.hbm [shape: f32[256,256], index: 1, kind: input, shape index: {}]
  %s2 = inlined_call_operand.hbm [shape: f32[3,256], index: 2, kind: input, shape index: {}]
  %s3 = inlined_call_operand.hbm [shape: f32[48,256], index: 3, kind: output, shape index: {}]
  %s4 = sld [smem:[#allocation0]]
  $region57: #{id_head_fwd.1} parent=0
    _
  %s6 = ssub.s32 1, %s4
  %s7 = scalar_select 0, %s6, %s4
  $region1: #{id_head_fwd.1} parent=0
    #allocation2 [shape = 'u8[49152]{0}', space=vmem, size = 0xc000, scoped, tag = 'input window, operand 0']
    #allocation3 [shape = 's32[2]{0}', space=sflag, size = 0x8, scoped, tag = 'scoped memory for id_head_fwd.1']
    #allocation4 [shape = 's32[2]{0}', space=sflag, size = 0x8, scoped, tag = 'scoped memory for id_head_fwd.1']
    #allocation5 [shape = 'u8[262144]{0}', space=vmem, size = 0x40000, scoped, tag = 'input window, operand 1, single buffered']
    #allocation6 [shape = 's32[1]{0}', space=sflag, size = 0x4, scoped, tag = 'scoped memory for id_head_fwd.1']
    #allocation7 [shape = 'u8[4096]{0}', space=vmem, size = 0x1000, scoped, tag = 'input window, operand 2, single buffered']
    #allocation8 [shape = 'u8[49152]{0}', space=vmem, size = 0xc000, scoped, tag = 'output window, operand 0']
    %8 = vsyncpa [#allocation3], 0
    %s9 = scalar_lea.sflag [#allocation3], 1
    %10 = vsyncpa %s9, 0
    %11 = vsyncpa [#allocation6], 0
    %12 = vsyncpa [#allocation4], 0
    %s13 = scalar_lea.sflag [#allocation4], 1
    %14 = vsyncpa %s13, 0
    loop: start=0, step=1, limit=4
    $region2: #{id_head_fwd.1} parent=1 // loop_pre_header
      _
    $region3: #{id_head_fwd.1} parent=1 // loop_header
      %s16 = sphi 0, %s20
      %p17 = scmp.ge.s32.totalorder %s16, 4
      %s26 = sphi 0, %s28
      %s29 = sphi 0, %s26
      %s30 = sphi 0, %s29
      %s46 = sphi 0, %s30
      %s50 = sphi 0, %s50
      %s52 = sphi 0, %s50
      %s53 = sphi 0, %s52
      %s67 = sphi 0, %s53
      %s71 = sphi 0, %s71
      %s73 = sphi 0, %s71
      %s74 = sphi 0, %s73
      %s88 = sphi 0, %s74
      %s94 = sphi 0, %s96
      %s97 = sphi 0, %s94
      %s98 = sphi 0, %s97
      %s114 = sphi 0, %s98
    $region4: #{id_head_fwd.1} parent=1 // loop_header_branch
      %19 = sbr.rel (%p17) target = $region8
    $region5: #{id_head_fwd.1} parent=1 // loop_body
      %s21 = ssub.s32 %s16, 1
      %s22 = ssub.s32 %s16, 2
      %s23 = sadd.s32 %s16, 1
      %s24 = ssub.s32 %s16, %s23
      %p25 = scmp.eq.s32.totalorder %s24, 0
      %s27 = sadd.s32 %s26, 1
      %s28 = scalar_select %p25, %s26, %s27
      %p31 = pneg %p25
      %p32 = scmp.eq.s32.totalorder %s16, 1
      %p33 = por %p31, %p32
      %p34 = scmp.ne.s32.totalorder %s26, %s29
      %p35 = scmp.eq.s32.totalorder %s16, 0
      %p36 = por %p34, %p35
      %p37 = scmp.ne.s32.totalorder %s26, %s29
      %p38 = scmp.eq.s32.totalorder %s21, 1
      %p39 = por %p37, %p38
      %p40 = scmp.ne.s32.totalorder %s29, %s30
      %p41 = scmp.eq.s32.totalorder %s21, 0
      %p42 = por %p40, %p41
      %p43 = scmp.ne.s32.totalorder %s29, %s30
      %p44 = scmp.eq.s32.totalorder %s22, 1
      %p45 = por %p43, %p44
      %p47 = scmp.ne.s32.totalorder %s30, %s46
      %p48 = scmp.eq.s32.totalorder %s22, 0
      %p49 = por %p47, %p48
      %s51 = sadd.s32 %s50, 1
      %p54 = scmp.eq.s32.totalorder %s16, 1
      %p55 = scmp.ne.s32.totalorder %s50, %s52
      %p56 = scmp.eq.s32.totalorder %s16, 0
      %p57 = por %p55, %p56
      %p58 = scmp.ne.s32.totalorder %s50, %s52
      %p59 = scmp.eq.s32.totalorder %s21, 1
      %p60 = por %p58, %p59
      %p61 = scmp.ne.s32.totalorder %s52, %s53
      %p62 = scmp.eq.s32.totalorder %s21, 0
      %p63 = por %p61, %p62
      %p64 = scmp.ne.s32.totalorder %s52, %s53
      %p65 = scmp.eq.s32.totalorder %s22, 1
      %p66 = por %p64, %p65
      %p68 = scmp.ne.s32.totalorder %s53, %s67
      %p69 = scmp.eq.s32.totalorder %s22, 0
      %p70 = por %p68, %p69
      %s72 = sadd.s32 %s71, 1
      %p75 = scmp.eq.s32.totalorder %s16, 1
      %p76 = scmp.ne.s32.totalorder %s71, %s73
      %p77 = scmp.eq.s32.totalorder %s16, 0
      %p78 = por %p76, %p77
      %p79 = scmp.ne.s32.totalorder %s71, %s73
      %p80 = scmp.eq.s32.totalorder %s21, 1
      %p81 = por %p79, %p80
      %p82 = scmp.ne.s32.totalorder %s73, %s74
      %p83 = scmp.eq.s32.totalorder %s21, 0
      %p84 = por %p82, %p83
      %p85 = scmp.ne.s32.totalorder %s73, %s74
      %p86 = scmp.eq.s32.totalorder %s22, 1
      %p87 = por %p85, %p86
      %p89 = scmp.ne.s32.totalorder %s74, %s88
      %p90 = scmp.eq.s32.totalorder %s22, 0
      %p91 = por %p89, %p90
      %s92 = ssub.s32 %s16, %s23
      %p93 = scmp.eq.s32.totalorder %s92, 0
      %s95 = sadd.s32 %s94, 1
      %s96 = scalar_select %p93, %s94, %s95
      %p99 = pneg %p93
      %p100 = scmp.eq.s32.totalorder %s16, 1
      %p101 = por %p99, %p100
      %p102 = scmp.ne.s32.totalorder %s94, %s97
      %p103 = scmp.eq.s32.totalorder %s16, 0
      %p104 = por %p102, %p103
      %p105 = scmp.ne.s32.totalorder %s94, %s97
      %p106 = scmp.eq.s32.totalorder %s21, 1
      %p107 = por %p105, %p106
      %p108 = scmp.ne.s32.totalorder %s97, %s98
      %p109 = scmp.eq.s32.totalorder %s21, 0
      %p110 = por %p108, %p109
      %p111 = scmp.ne.s32.totalorder %s97, %s98
      %p112 = scmp.eq.s32.totalorder %s22, 1
      %p113 = por %p111, %p112
      %p115 = scmp.ne.s32.totalorder %s98, %s114
      %p116 = scmp.eq.s32.totalorder %s22, 0
      %p117 = por %p115, %p116
      %p118 = scmp.le.s32.totalorder 1, %s16
      %p119 = scmp.lt.s32.totalorder %s16, 3
      %p120 = pnand %p118, %p119
      %p121 = pneg %p120
      // Predicated region
      $region9: #{id_head_fwd.1} parent=5 // pred_check
        _
      $region10: #{id_head_fwd.1} parent=5 // pred_check_branch
        %123 = sbr.rel (%p120) target = $region12
      $region11: #{id_head_fwd.1} parent=5 // pred_region
        %s124 = ssub.s32 %s16, 1
        // Predicated region
        $region13: #{id_head_fwd.1} parent=11 // pred_check
          %p125 = pneg %p63
        $region14: #{id_head_fwd.1} parent=11 // pred_check_branch
          %127 = sbr.rel (%p125) target = $region16
        $region15: #{id_head_fwd.1} parent=11 // pred_region
          %129 = vsyncadd [#allocation6], 0
          %s130 = sshll.u32 %s1, 4
          %s131 = int_to_ptr.hbm [resolvable:$true] %s130
          %s132 = sshll.u32 [#allocation5], 4
          %s133 = int_to_ptr.vmem [resolvable:$true] %s132
          %138 = dma.hbm_to_vmem [thread:$0]  %s131, 8192, %s133, [#allocation6], 256, 256, 16
        $region16: #{id_head_fwd.1} parent=11 // pred_fallthru
          _
        // Predicated region
        $region17: #{id_head_fwd.1} parent=11 // pred_check
          %p139 = pneg %p84
        $region18: #{id_head_fwd.1} parent=11 // pred_check_branch
          %141 = sbr.rel (%p139) target = $region20
        $region19: #{id_head_fwd.1} parent=11 // pred_region
          %143 = vsyncadd [#allocation6], 0
          %s145 = sshll.u32 %s2, 4
          %s146 = int_to_ptr.hbm [resolvable:$true] %s145
          %s147 = sshll.u32 [#allocation7], 4
          %s148 = int_to_ptr.vmem [resolvable:$true] %s147
          %150 = dma.hbm_to_vmem [thread:$0]  %s146, 128, %s148, [#allocation6]
        $region20: #{id_head_fwd.1} parent=11 // pred_fallthru
          _
      $region12: #{id_head_fwd.1} parent=5 // pred_fallthru
        _
      %p151 = scmp.lt.s32.totalorder %s16, 2
      // Predicated region
      $region21: #{id_head_fwd.1} parent=5 // pred_check
        %p152 = pneg %p151
      $region22: #{id_head_fwd.1} parent=5 // pred_check_branch
        %154 = sbr.rel (%p152) target = $region24
      $region23: #{id_head_fwd.1} parent=5 // pred_region
        // Predicated region
        $region25: #{id_head_fwd.1} parent=23 // pred_check
          %p155 = pneg %p36
        $region26: #{id_head_fwd.1} parent=23 // pred_check_branch
          %157 = sbr.rel (%p155) target = $region28
        $region27: #{id_head_fwd.1} parent=23 // pred_region
          %s158 = sand.u32 %s26, 1
          %s159 = scalar_lea.sflag [#allocation3], %s158
          %s160 = sand.u32 %s26, 1
          %s161 = smul.addr %s160, 48
          %s162 = scalar_lea.vmem [#allocation2], %s161
          %s163 = smul.u32 3, %s16
          %165 = vsyncadd %s159, 0
          %s166 = smul.addr %s163, 2
          %s167 = smul.addr %s166, 8
          %s168 = scalar_lea.hbm %s0, %s167
          %s169 = sshll.u32 %s168, 4
          %s170 = int_to_ptr.hbm [resolvable:$true] %s169
          %s171 = sshll.u32 %s162, 4
          %s172 = int_to_ptr.vmem [resolvable:$true] %s171
          %177 = dma.hbm_to_vmem [thread:$0]  %s170, 768, %s172, %s159, 256, 256, 16
        $region28: #{id_head_fwd.1} parent=23 // pred_fallthru
          _
      $region24: #{id_head_fwd.1} parent=5 // pred_fallthru
        _
      %p178 = scmp.le.s32.totalorder 1, %s16
      %p179 = scmp.lt.s32.totalorder %s16, 3
      %p180 = pnand %p178, %p179
      %p181 = pneg %p180
      // Predicated region
      $region29: #{id_head_fwd.1} parent=5 // pred_check
        _
      $region30: #{id_head_fwd.1} parent=5 // pred_check_branch
        %183 = sbr.rel (%p180) target = $region32
      $region31: #{id_head_fwd.1} parent=5 // pred_region
        %s184 = ssub.s32 %s16, 1
        %s185 = sand.u32 %s29, 1
        %s186 = scalar_lea.sflag [#allocation3], %s185
        %s187 = sand.u32 %s29, 1
        %s188 = smul.addr %s187, 48
        %s189 = scalar_lea.vmem [#allocation2], %s188
        // Predicated region
        $region33: #{id_head_fwd.1} parent=31 // pred_check
          %p190 = pneg %p42
        $region34: #{id_head_fwd.1} parent=31 // pred_check_branch
          %192 = sbr.rel (%p190) target = $region36
        $region35: #{id_head_fwd.1} parent=31 // pred_region
          %194 = dma.done %s186, 768
        $region36: #{id_head_fwd.1} parent=31 // pred_fallthru
          _
        // Predicated region
        $region37: #{id_head_fwd.1} parent=31 // pred_check
          %p195 = pneg %p63
        $region38: #{id_head_fwd.1} parent=31 // pred_check_branch
          %197 = sbr.rel (%p195) target = $region40
        $region39: #{id_head_fwd.1} parent=31 // pred_region
          %199 = dma.done [#allocation6], 8192
        $region40: #{id_head_fwd.1} parent=31 // pred_fallthru
          _
        // Predicated region
        $region41: #{id_head_fwd.1} parent=31 // pred_check
          %p200 = pneg %p84
        $region42: #{id_head_fwd.1} parent=31 // pred_check_branch
          %202 = sbr.rel (%p200) target = $region44
        $region43: #{id_head_fwd.1} parent=31 // pred_region
          %204 = dma.done [#allocation6], 128
        $region44: #{id_head_fwd.1} parent=31 // pred_fallthru
          _
        %s205 = sand.u32 %s29, 1
        %s206 = scalar_lea.sflag [#allocation3], %s205
        %s207 = sand.u32 %s29, 1
        %s208 = smul.addr %s207, 48
        %s209 = scalar_lea.vmem [#allocation2], %s208
        %p210 = pneg %p42
        %p211 = pneg %p39
        %p212 = pneg %p63
        %p213 = pneg %p60
        %p214 = pneg %p84
        %p215 = pneg %p81
        %p216 = pneg %p110
        %p217 = pneg %p107
        %s218 = sand.u32 %s97, 1
        %s219 = scalar_lea.sflag [#allocation4], %s218
        %s220 = sand.u32 %s97, 1
        %s221 = smul.addr %s220, 48
        %s222 = scalar_lea.vmem [#allocation8], %s221
        %s223 = smul.u32 3, %s21
        %s224 = smul.u32 3, %s21
        %v225 = vld [vmem:[%s189] sm:$0xff]
        %v226 = vld [vmem:[%s189 + $0x8] sm:$0xff]
        %v227 = vld [vmem:[%s189 + $0x10] sm:$0xff]
        %v228 = vld [vmem:[%s189 + $0x18] sm:$0xff]
        %v229 = vld [vmem:[%s189 + $0x20] sm:$0xff]
        %v230 = vld [vmem:[%s189 + $0x28] sm:$0xff]
        %v231 = vld [vmem:[#allocation5] sm:$0xff]
        %v232 = vld [vmem:[#allocation5 + $0x8] sm:$0xff]
        %v233 = vld [vmem:[#allocation5 + $0x10] sm:$0xff]
        %v234 = vld [vmem:[#allocation5 + $0x18] sm:$0xff]
        %v235 = vld [vmem:[#allocation5 + $0x20] sm:$0xff]
        %v236 = vld [vmem:[#allocation5 + $0x28] sm:$0xff]
        %v237 = vld [vmem:[#allocation5 + $0x30] sm:$0xff]
        %v238 = vld [vmem:[#allocation5 + $0x38] sm:$0xff]
        %v239 = vld [vmem:[#allocation5 + $0x40] sm:$0xff]
        %v240 = vld [vmem:[#allocation5 + $0x48] sm:$0xff]
        %v241 = vld [vmem:[#allocation5 + $0x50] sm:$0xff]
        %v242 = vld [vmem:[#allocation5 + $0x58] sm:$0xff]
        %v243 = vld [vmem:[#allocation5 + $0x60] sm:$0xff]
        %v244 = vld [vmem:[#allocation5 + $0x68] sm:$0xff]
        %v245 = vld [vmem:[#allocation5 + $0x70] sm:$0xff]
        %v246 = vld [vmem:[#allocation5 + $0x78] sm:$0xff]
        %v247 = vld [vmem:[#allocation5 + $0x80] sm:$0xff]
        %v248 = vld [vmem:[#allocation5 + $0x88] sm:$0xff]
        %v249 = vld [vmem:[#allocation5 + $0x90] sm:$0xff]
        %v250 = vld [vmem:[#allocation5 + $0x98] sm:$0xff]
        %v251 = vld [vmem:[#allocation5 + $0xa0] sm:$0xff]
        %v252 = vld [vmem:[#allocation5 + $0xa8] sm:$0xff]
        %v253 = vld [vmem:[#allocation5 + $0xb0] sm:$0xff]
        %v254 = vld [vmem:[#allocation5 + $0xb8] sm:$0xff]
        %v255 = vld [vmem:[#allocation5 + $0xc0] sm:$0xff]
        %v256 = vld [vmem:[#allocation5 + $0xc8] sm:$0xff]
        %v257 = vld [vmem:[#allocation5 + $0xd0] sm:$0xff]
        %v258 = vld [vmem:[#allocation5 + $0xd8] sm:$0xff]
        %v259 = vld [vmem:[#allocation5 + $0xe0] sm:$0xff]
        %v260 = vld [vmem:[#allocation5 + $0xe8] sm:$0xff]
        %v261 = vld [vmem:[#allocation5 + $0xf0] sm:$0xff]
        %v262 = vld [vmem:[#allocation5 + $0xf8] sm:$0xff]
        %v263 = vld [vmem:[#allocation5 + $0x100] sm:$0xff]
        %v264 = vld [vmem:[#allocation5 + $0x108] sm:$0xff]
        %v265 = vld [vmem:[#allocation5 + $0x110] sm:$0xff]
        %v266 = vld [vmem:[#allocation5 + $0x118] sm:$0xff]
        %v267 = vld [vmem:[#allocation5 + $0x120] sm:$0xff]
        %v268 = vld [vmem:[#allocation5 + $0x128] sm:$0xff]
        %v269 = vld [vmem:[#allocation5 + $0x130] sm:$0xff]
        %v270 = vld [vmem:[#allocation5 + $0x138] sm:$0xff]
        %v271 = vld [vmem:[#allocation5 + $0x140] sm:$0xff]
        %v272 = vld [vmem:[#allocation5 + $0x148] sm:$0xff]
        %v273 = vld [vmem:[#allocation5 + $0x150] sm:$0xff]
        %v274 = vld [vmem:[#allocation5 + $0x158] sm:$0xff]
        %v275 = vld [vmem:[#allocation5 + $0x160] sm:$0xff]
        %v276 = vld [vmem:[#allocation5 + $0x168] sm:$0xff]
        %v277 = vld [vmem:[#allocation5 + $0x170] sm:$0xff]
        %v278 = vld [vmem:[#allocation5 + $0x178] sm:$0xff]
        %v279 = vld [vmem:[#allocation5 + $0x180] sm:$0xff]
        %v280 = vld [vmem:[#allocation5 + $0x188] sm:$0xff]
        %v281 = vld [vmem:[#allocation5 + $0x190] sm:$0xff]
        %v282 = vld [vmem:[#allocation5 + $0x198] sm:$0xff]
        %v283 = vld [vmem:[#allocation5 + $0x1a0] sm:$0xff]
        %v284 = vld [vmem:[#allocation5 + $0x1a8] sm:$0xff]
        %v285 = vld [vmem:[#allocation5 + $0x1b0] sm:$0xff]
        %v286 = vld [vmem:[#allocation5 + $0x1b8] sm:$0xff]
        %v287 = vld [vmem:[#allocation5 + $0x1c0] sm:$0xff]
        %v288 = vld [vmem:[#allocation5 + $0x1c8] sm:$0xff]
        %v289 = vld [vmem:[#allocation5 + $0x1d0] sm:$0xff]
        %v290 = vld [vmem:[#allocation5 + $0x1d8] sm:$0xff]
        %v291 = vld [vmem:[#allocation5 + $0x1e0] sm:$0xff]
        %v292 = vld [vmem:[#allocation5 + $0x1e8] sm:$0xff]
        %v293 = vld [vmem:[#allocation5 + $0x1f0] sm:$0xff]
        %v294 = vld [vmem:[#allocation5 + $0x1f8] sm:$0xff]
        %v295 = vld [vmem:[#allocation7] ss:$4 sm:$0x3]
        %v297 = vperm.slane %v295, 0
        %v298 = vperm.slane %v295, 1
        %301 = vmatpush.msra.mxu0 %v261
        %302 = vmatpush.msra.mxu0 %v259
        %303 = vmatpush.msra.mxu0 %v257
        %304 = vmatpush.msra.mxu0 %v255
        %305 = vmatpush.msra.mxu0 %v253
        %306 = vmatpush.msra.mxu0 %v251
        %307 = vmatpush.msra.mxu0 %v249
        %308 = vmatpush.msra.mxu0 %v247
        %309 = vmatpush.msra.mxu0 %v245
        %310 = vmatpush.msra.mxu0 %v243
        %311 = vmatpush.msra.mxu0 %v241
        %312 = vmatpush.msra.mxu0 %v239
        %313 = vmatpush.msra.mxu0 %v237
        %314 = vmatpush.msra.mxu0 %v235
        %315 = vmatpush.msra.mxu0 %v233
        %316 = vmatpush.msra.mxu0 %v231
        %317 = vmatmul.f32.gmra.mxu0 %v225
        %v318 = vpop.f32.mrf.mxu0
        %v319 = vadd.f32 %v297, %v318
        %320 = vmatmul.f32.gmra.mxu0 %v227
        %v321 = vpop.f32.mrf.mxu0
        %v322 = vadd.f32 %v297, %v321
        %323 = vmatmul.f32.gmra.mxu0 %v229
        %v324 = vpop.f32.mrf.mxu0
        %v325 = vadd.f32 %v297, %v324
        %326 = vdwg.mxu0
        %327 = vmatpush.msra.mxu0 %v293
        %328 = vmatpush.msra.mxu0 %v291
        %329 = vmatpush.msra.mxu0 %v289
        %330 = vmatpush.msra.mxu0 %v287
        %331 = vmatpush.msra.mxu0 %v285
        %332 = vmatpush.msra.mxu0 %v283
        %333 = vmatpush.msra.mxu0 %v281
        %334 = vmatpush.msra.mxu0 %v279
        %335 = vmatpush.msra.mxu0 %v277
        %336 = vmatpush.msra.mxu0 %v275
        %337 = vmatpush.msra.mxu0 %v273
        %338 = vmatpush.msra.mxu0 %v271
        %339 = vmatpush.msra.mxu0 %v269
        %340 = vmatpush.msra.mxu0 %v267
        %341 = vmatpush.msra.mxu0 %v265
        %342 = vmatpush.msra.mxu0 %v263
        %343 = vmatmul.f32.gmra.mxu0 %v226
        %v344 = vpop.f32.mrf.mxu0
        %v345 = vadd.f32 %v319, %v344
        %346 = vmatmul.f32.gmra.mxu0 %v228
        %v347 = vpop.f32.mrf.mxu0
        %v348 = vadd.f32 %v322, %v347
        %349 = vmatmul.f32.gmra.mxu0 %v230
        %v350 = vpop.f32.mrf.mxu0
        %v351 = vadd.f32 %v325, %v350
        %352 = vdwg.mxu0
        %353 = vmatpush.msra.mxu0 %v262
        %354 = vmatpush.msra.mxu0 %v260
        %355 = vmatpush.msra.mxu0 %v258
        %356 = vmatpush.msra.mxu0 %v256
        %357 = vmatpush.msra.mxu0 %v254
        %358 = vmatpush.msra.mxu0 %v252
        %359 = vmatpush.msra.mxu0 %v250
        %360 = vmatpush.msra.mxu0 %v248
        %361 = vmatpush.msra.mxu0 %v246
        %362 = vmatpush.msra.mxu0 %v244
        %363 = vmatpush.msra.mxu0 %v242
        %364 = vmatpush.msra.mxu0 %v240
        %365 = vmatpush.msra.mxu0 %v238
        %366 = vmatpush.msra.mxu0 %v236
        %367 = vmatpush.msra.mxu0 %v234
        %368 = vmatpush.msra.mxu0 %v232
        %369 = vmatmul.f32.gmra.mxu0 %v225
        %v370 = vpop.f32.mrf.mxu0
        %v371 = vadd.f32 %v298, %v370
        %372 = vmatmul.f32.gmra.mxu0 %v227
        %v373 = vpop.f32.mrf.mxu0
        %v374 = vadd.f32 %v298, %v373
        %375 = vmatmul.f32.gmra.mxu0 %v229
        %v376 = vpop.f32.mrf.mxu0
        %v377 = vadd.f32 %v298, %v376
        %378 = vdwg.mxu0
        %379 = vmatpush.msra.mxu0 %v294
        %380 = vmatpush.msra.mxu0 %v292
        %381 = vmatpush.msra.mxu0 %v290
        %382 = vmatpush.msra.mxu0 %v288
        %383 = vmatpush.msra.mxu0 %v286
        %384 = vmatpush.msra.mxu0 %v284
        %385 = vmatpush.msra.mxu0 %v282
        %386 = vmatpush.msra.mxu0 %v280
        %387 = vmatpush.msra.mxu0 %v278
        %388 = vmatpush.msra.mxu0 %v276
        %389 = vmatpush.msra.mxu0 %v274
        %390 = vmatpush.msra.mxu0 %v272
        %391 = vmatpush.msra.mxu0 %v270
        %392 = vmatpush.msra.mxu0 %v268
        %393 = vmatpush.msra.mxu0 %v266
        %394 = vmatpush.msra.mxu0 %v264
        %395 = vmatmul.f32.gmra.mxu0 %v226
        %v396 = vpop.f32.mrf.mxu0
        %v397 = vadd.f32 %v371, %v396
        %398 = vmatmul.f32.gmra.mxu0 %v228
        %v399 = vpop.f32.mrf.mxu0
        %v400 = vadd.f32 %v374, %v399
        %401 = vmatmul.f32.gmra.mxu0 %v230
        %v402 = vpop.f32.mrf.mxu0
        %v403 = vadd.f32 %v377, %v402
        %404 = vdwg.mxu0
        %v405 = vadd.f32 %v345, %v397
        %406 = vadd.xlane.f32.xlu0 %v405
        %v407 = vpop.xlane.xlu0 %406
        %v408 = vadd.f32 %v348, %v400
        %409 = vadd.xlane.f32.xlu0 %v408
        %v410 = vpop.xlane.xlu0 %409
        %v411 = vadd.f32 %v351, %v403
        %412 = vadd.xlane.f32.xlu0 %v411
        %v413 = vpop.xlane.xlu0 %412
        %v414 = vmul.f32 %v407, 0.0052083335
        %v415 = vmul.f32 %v410, 0.0052083335
        %v416 = vmul.f32 %v413, 0.0052083335
        %v417 = vsub.f32 %v345, %v414
        %v418 = vsub.f32 %v397, %v414
        %v419 = vsub.f32 %v348, %v415
        %v420 = vsub.f32 %v400, %v415
        %v421 = vsub.f32 %v351, %v416
        %v422 = vsub.f32 %v403, %v416
        %v423 = vmul.f32 %v417, %v417
        %v424 = vmul.f32 %v418, %v418
        %v425 = vmul.f32 %v419, %v419
        %v426 = vmul.f32 %v420, %v420
        %v427 = vmul.f32 %v421, %v421
        %v428 = vmul.f32 %v422, %v422
        %v429 = vadd.f32 %v423, %v424
        %430 = vadd.xlane.f32.xlu0 %v429
        %v431 = vpop.xlane.xlu0 %430
        %v432 = vadd.f32 %v425, %v426
        %433 = vadd.xlane.f32.xlu0 %v432
        %v434 = vpop.xlane.xlu0 %433
        %v435 = vadd.f32 %v427, %v428
        %436 = vadd.xlane.f32.xlu0 %v435
        %v437 = vpop.xlane.xlu0 %436
        %v438 = vmul.f32 %v414, %v414
        %v439 = vmul.f32 %v415, %v415
        %v440 = vmul.f32 %v416, %v416
        %v441 = vmul.f32 %v438, 64.0
        %v442 = vmul.f32 %v439, 64.0
        %v443 = vmul.f32 %v440, 64.0
        %v444 = vsub.f32 %v431, %v441
        %v445 = vsub.f32 %v434, %v442
        %v446 = vsub.f32 %v437, %v443
        %v447 = vmax.f32 %v444, 0.0
        %v448 = vmax.f32 %v445, 0.0
        %v449 = vmax.f32 %v446, 0.0
        %v450 = vmul.f32 %v447, 0.005235602
        %v451 = vmul.f32 %v448, 0.005235602
        %v452 = vmul.f32 %v449, 0.005235602
        %v453 = vrsqrt.pop %v450
        %v454 = vmul.f32 %v453, %v450
        %v455 = vmul.f32 %v454, %v453
        %v456 = vmul.f32 0.5, %v455
        %v457 = vsub.f32 1.5, %v456
        %v458 = vmul.f32 %v453, %v457
        %v459 = vmul.f32 %v450, %v458
        %vm460 = vcmp.eq.f32.partialorder %v450, inf
        %v461 = vsel %vm460, %v450, %v459
        %vm462 = vcmp.eq.f32.partialorder %v450, 0.0
        %v463 = vand.u32 %v450, 2147483648
        %v464 = vsel %vm462, %v463, %v461
        %v465 = vrsqrt.pop %v451
        %v466 = vmul.f32 %v465, %v451
        %v467 = vmul.f32 %v466, %v465
        %v468 = vmul.f32 0.5, %v467
        %v469 = vsub.f32 1.5, %v468
        %v470 = vmul.f32 %v465, %v469
        %v471 = vmul.f32 %v451, %v470
        %vm472 = vcmp.eq.f32.partialorder %v451, inf
        %v473 = vsel %vm472, %v451, %v471
        %vm474 = vcmp.eq.f32.partialorder %v451, 0.0
        %v475 = vand.u32 %v451, 2147483648
        %v476 = vsel %vm474, %v475, %v473
        %v477 = vrsqrt.pop %v452
        %v478 = vmul.f32 %v477, %v452
        %v479 = vmul.f32 %v478, %v477
        %v480 = vmul.f32 0.5, %v479
        %v481 = vsub.f32 1.5, %v480
        %v482 = vmul.f32 %v477, %v481
        %v483 = vmul.f32 %v452, %v482
        %vm484 = vcmp.eq.f32.partialorder %v452, inf
        %v485 = vsel %vm484, %v452, %v483
        %vm486 = vcmp.eq.f32.partialorder %v452, 0.0
        %v487 = vand.u32 %v452, 2147483648
        %v488 = vsel %vm486, %v487, %v485
        %v489 = vadd.f32 %v464, 1e-05
        %v490 = vadd.f32 %v476, 1e-05
        %v491 = vadd.f32 %v488, 1e-05
        %v492 = vrcp.pop %v489
        %v493 = vrcp.pop %v490
        %v494 = vrcp.pop %v491
        %s495 = scalar_lea.vmem [#allocation7], 1
        %v496 = vld [vmem:[%s495] ss:$4 sm:$0x3]
        %v498 = vperm.slane %v496, 0
        %v499 = vperm.slane %v496, 1
        %v502 = vmul.f32 %v492, %v498
        %v503 = vmul.f32 %v492, %v499
        %v504 = vmul.f32 %v493, %v498
        %v505 = vmul.f32 %v493, %v499
        %v506 = vmul.f32 %v494, %v498
        %v507 = vmul.f32 %v494, %v499
        %v508 = vmul.f32 %v417, %v502
        %v509 = vmul.f32 %v418, %v503
        %v510 = vmul.f32 %v419, %v504
        %v511 = vmul.f32 %v420, %v505
        %v512 = vmul.f32 %v421, %v506
        %v513 = vmul.f32 %v422, %v507
        %s514 = scalar_lea.vmem [#allocation7], 2
        %v515 = vld [vmem:[%s514] ss:$4 sm:$0x3]
        %v517 = vperm.slane %v515, 0
        %v518 = vperm.slane %v515, 1
        %v521 = vadd.f32 %v508, %v517
        %v522 = vadd.f32 %v509, %v518
        %v523 = vadd.f32 %v510, %v517
        %v524 = vadd.f32 %v511, %v518
        %v525 = vadd.f32 %v512, %v517
        %v526 = vadd.f32 %v513, %v518
        %v527 = vmax.f32 %v521, 0.0
        %v528 = vmax.f32 %v522, 0.0
        %v529 = vmax.f32 %v523, 0.0
        %v530 = vmax.f32 %v524, 0.0
        %v531 = vmax.f32 %v525, 0.0
        %v532 = vmax.f32 %v526, 0.0
        %533 = vst [vmem:[%s222] sm:$0xff] %v527
        %534 = vst [vmem:[%s222 + $0x8] sm:$0xff] %v528
        %535 = vst [vmem:[%s222 + $0x10] sm:$0xff] %v529
        %536 = vst [vmem:[%s222 + $0x18] sm:$0xff] %v530
        %537 = vst [vmem:[%s222 + $0x20] sm:$0xff] %v531
        %538 = vst [vmem:[%s222 + $0x28] sm:$0xff] %v532
        %s539 = sand.u32 %s97, 1
        %s540 = scalar_lea.sflag [#allocation4], %s539
        %s541 = sand.u32 %s97, 1
        %s542 = smul.addr %s541, 48
        %s543 = scalar_lea.vmem [#allocation8], %s542
        // Predicated region
        $region45: #{id_head_fwd.1} parent=31 // pred_check
          %p544 = pneg %p107
        $region46: #{id_head_fwd.1} parent=31 // pred_check_branch
          %546 = sbr.rel (%p544) target = $region48
        $region47: #{id_head_fwd.1} parent=31 // pred_region
          %s547 = smul.u32 3, %s21
          %549 = vsyncadd %s540, 0
          %s550 = smul.addr %s547, 2
          %s551 = smul.addr %s550, 8
          %s552 = scalar_lea.hbm %s3, %s551
          %s553 = sshll.u32 %s543, 4
          %s554 = int_to_ptr.vmem [resolvable:$true] %s553
          %s555 = sshll.u32 %s552, 4
          %s556 = int_to_ptr.hbm [resolvable:$true] %s555
          %561 = dma.vmem_to_hbm [thread:$0]  %s554, 768, %s556, %s540, 256, 256, 16
        $region48: #{id_head_fwd.1} parent=31 // pred_fallthru
          _
      $region32: #{id_head_fwd.1} parent=5 // pred_fallthru
        _
      %p562 = scmp.le.s32.totalorder 2, %s16
      // Predicated region
      $region49: #{id_head_fwd.1} parent=5 // pred_check
        %p563 = pneg %p562
      $region50: #{id_head_fwd.1} parent=5 // pred_check_branch
        %565 = sbr.rel (%p563) target = $region52
      $region51: #{id_head_fwd.1} parent=5 // pred_region
        %s566 = ssub.s32 %s16, 2
        // Predicated region
        $region53: #{id_head_fwd.1} parent=51 // pred_check
          %p567 = pneg %p113
        $region54: #{id_head_fwd.1} parent=51 // pred_check_branch
          %569 = sbr.rel (%p567) target = $region56
        $region55: #{id_head_fwd.1} parent=51 // pred_region
          %s570 = sand.u32 %s98, 1
          %s571 = scalar_lea.sflag [#allocation4], %s570
          %s572 = sand.u32 %s98, 1
          %s573 = smul.addr %s572, 48
          %s574 = scalar_lea.vmem [#allocation8], %s573
          %576 = dma.done %s571, 768
        $region56: #{id_head_fwd.1} parent=51 // pred_fallthru
          _
      $region52: #{id_head_fwd.1} parent=5 // pred_fallthru
        _
    $region6: #{id_head_fwd.1} parent=1 // loop_footer
      %s20 = sadd.s32 1, %s16
    $region7: #{id_head_fwd.1} parent=1 // loop_footer_branch
      %15 = sbr.rel target = $region3
    $region8: #{id_head_fwd.1} parent=1 // loop_exit
      _
    %577 = vsyncpa [#allocation3], 1
    %s578 = scalar_lea.sflag [#allocation3], 1
    %579 = vsyncpa %s578, 1
    %580 = vsyncpa [#allocation6], 1
    %581 = vsyncpa [#allocation4], 1
    %s582 = scalar_lea.sflag [#allocation4], 1
    %583 = vsyncpa %s582, 1

</llo_original>
